<compile_context>
chip_gen: v5e
topology: v5e:2x2
jax: 0.10.0
libtpu: 0.0.40
codegen_flags: <defaults>
</compile_context>

<pallas_src>
import jax
import jax.numpy as jnp
from jax.experimental import pallas as pl
from jax.experimental.pallas import tpu as pltpu


def mlp_kernel(x_ref, w1_ref, b1_ref, w2t_ref, b2_ref, o_ref):
    # x_ref:   [TB, D]   f32  (batch tile of flattened input)
    # w1_ref:  [D, HID]  bf16 (VMEM-resident across batch tiles)
    # b1_ref:  [1, HID]  f32
    # w2t_ref: [1, HID]  f32  (second-layer weight, transposed)
    # b2_ref:  [1, 1]    f32  (SMEM scalar)
    # o_ref:   [TB, 1]   f32
    #
    # Layer 1 + ReLU: cast the x tile to bf16 on the VPU (hidden under the x
    # DMA), then a bf16 MXU matmul with f32 accumulation.
    x_bf = x_ref[...].astype(jnp.bfloat16)
    h = jnp.dot(x_bf, w1_ref[...], preferred_element_type=jnp.float32)
    h = jnp.maximum(h + b1_ref[...], 0.0)
    # Layer 2 (out_features == 1): VPU multiply + XLU row reduction instead of
    # a degenerate [HID, 1] MXU matmul.
    y = jnp.sum(h * w2t_ref[...], axis=-1, keepdims=True) + b2_ref[0, 0]
    # Sigmoid: one EUP exp + one EUP (approx) reciprocal.
    e = jnp.exp(-y)
    o_ref[...] = pl.reciprocal(1.0 + e, approx=True).astype(o_ref.dtype)


def _pick_batch_tile(batch, tile_b):
    """Large tile (amortizes grid-step overhead), multiple of 128, and at least
    2 tiles for big batches so both v7x TensorCores get work."""
    if batch <= 256:
        return batch                       # single block == full batch dim
    half = max(128, (batch // 2 // 128) * 128)   # >= 2 tiles
    tb = max(128, min(tile_b, half))
    return (tb // 128) * 128


def simple_mlp_forward(x_nchw, w1, b1, w2, b2, *, tile_b=1024):
    """x_nchw: [B, C, H, W] f32. w1: [D, HID], b1: [HID]-like, w2: [HID, 1],
    b2: scalar-like. Returns [B, 1] f32 sigmoid probabilities."""
    B = x_nchw.shape[0]
    x_flat = x_nchw.reshape(B, -1)                     # == torch x.view(B, -1)
    D = x_flat.shape[1]
    HID = w1.shape[1]

    # Weights/bias prep: w1 cast to bf16 (tiny, VMEM-resident), w2 transposed
    # to a lane-dense [1, HID] row, b2 as an SMEM scalar.
    w1_bf = jnp.asarray(w1, jnp.float32).astype(jnp.bfloat16)
    b1_2d = jnp.asarray(b1, jnp.float32).reshape(1, HID)
    w2t = jnp.asarray(w2, jnp.float32).reshape(1, HID)
    b2_2d = jnp.asarray(b2, jnp.float32).reshape(1, 1)

    tb = _pick_batch_tile(B, tile_b)
    grid = (pl.cdiv(B, tb),)   # ragged last tile handled by Pallas, no jnp.pad

    return pl.pallas_call(
        mlp_kernel,
        out_shape=jax.ShapeDtypeStruct((B, 1), jnp.float32),
        grid=grid,
        in_specs=[
            pl.BlockSpec((tb, D), lambda i: (i, 0)),            # x: batch-tiled
            pl.BlockSpec((D, HID), lambda i: (0, 0)),           # w1: resident
            pl.BlockSpec((1, HID), lambda i: (0, 0)),           # b1: resident
            pl.BlockSpec((1, HID), lambda i: (0, 0)),           # w2^T: resident
            pl.BlockSpec(memory_space=pltpu.MemorySpace.SMEM),  # b2 scalar
        ],
        out_specs=pl.BlockSpec((tb, 1), lambda i: (i, 0)),
        compiler_params=pltpu.CompilerParams(
            dimension_semantics=("parallel",),
            vmem_limit_bytes=48 * 1024 * 1024,
        ),
    )(x_flat.astype(jnp.float32), w1_bf, b1_2d, w2t, b2_2d)


if __name__ == "__main__":
    key = jax.random.PRNGKey(0)
    kx, kw1, kb1, kw2, kb2 = jax.random.split(key, 5)

    # Small shapes consistent with the module: batch=2, channels=4, 16x16
    # spatial => input_size = 4*16*16 = 1024, hidden = 256 (fixed), out = 1.
    B, C, H, W = 2, 4, 16, 16
    D = C * H * W
    HID = 256

    x = jax.random.normal(kx, (B, C, H, W), dtype=jnp.float32)

    # Deterministic nn.Linear-style uniform init.
    bound1 = 1.0 / (D ** 0.5)
    w1 = jax.random.uniform(kw1, (D, HID), jnp.float32, -bound1, bound1)
    b1 = jax.random.uniform(kb1, (HID,), jnp.float32, -bound1, bound1)
    bound2 = 1.0 / (HID ** 0.5)
    w2 = jax.random.uniform(kw2, (HID, 1), jnp.float32, -bound2, bound2)
    b2 = jax.random.uniform(kb2, (1,), jnp.float32, -bound2, bound2)

    out = simple_mlp_forward(x, w1, b1, w2, b2)
    out = jax.block_until_ready(out)

    # Pure-JAX f32 reference (module semantics). Tolerance covers the bf16 MXU
    # matmul and the approx EUP reciprocal in the sigmoid.
    ref = jax.nn.sigmoid(
        jnp.maximum(x.reshape(B, -1) @ w1 + b1[None, :], 0.0) @ w2 + b2[None, :]
    )
    assert out.shape == (B, 1), out.shape
    assert jnp.allclose(out, ref, atol=1e-2), "mismatch vs reference"

    print("KERNEL_OK")
</pallas_src>

<mosaic_0001>
module attributes {stable_mosaic.version = 11 : i64} {
  func.func @mlp_kernel(%arg0: i32, %arg1: memref<2x1024xf32, #tpu.memory_space<vmem>>, %arg2: memref<1024x256xbf16, #tpu.memory_space<vmem>>, %arg3: memref<1x256xf32, #tpu.memory_space<vmem>>, %arg4: memref<1x256xf32, #tpu.memory_space<vmem>>, %arg5: memref<1x1xf32, #tpu.memory_space<smem>>, %arg6: memref<2x1xf32, #tpu.memory_space<vmem>>) attributes {dimension_semantics = [#tpu.dimension_semantics<parallel>], iteration_bounds = array<i64: 1>, scalar_prefetch = 0 : i64, scratch_operands = 0 : i64, tpu.core_type = #tpu.core_type<tc>, window_params = [{transform_indices = @transform_0, window_bounds = array<i64: 2, 1024>}, {pipeline_mode = #tpu.pipeline_mode<synchronous>, transform_indices = @transform_1, window_bounds = array<i64: 1024, 256>}, {pipeline_mode = #tpu.pipeline_mode<synchronous>, transform_indices = @transform_2, window_bounds = array<i64: 1, 256>}, {pipeline_mode = #tpu.pipeline_mode<synchronous>, transform_indices = @transform_3, window_bounds = array<i64: 1, 256>}, {transform_indices = @transform_4, window_bounds = array<i64: 1, 1>}, {transform_indices = @transform_5, window_bounds = array<i64: 2, 1>}]} {
    %c0 = arith.constant 0 : index
    %c0_0 = arith.constant 0 : index
    %0 = vector.load %arg1[%c0, %c0_0] : memref<2x1024xf32, #tpu.memory_space<vmem>>, vector<2x1024xf32>
    %1 = arith.truncf %0 : vector<2x1024xf32> to vector<2x1024xbf16>
    %c0_1 = arith.constant 0 : index
    %c0_2 = arith.constant 0 : index
    %2 = vector.load %arg2[%c0_1, %c0_2] : memref<1024x256xbf16, #tpu.memory_space<vmem>>, vector<1024x256xbf16>
    %cst = arith.constant dense<0.000000e+00> : vector<2x256xf32>
    %3 = tpu.matmul %1, %2, %cst {dimension_numbers = #tpu.dot_dimension_numbers<[1], [0], [0], [1], [0, 0, 1, 1], [], []>} : vector<2x1024xbf16>, vector<1024x256xbf16>, vector<2x256xf32> -> vector<2x256xf32>
    %c0_3 = arith.constant 0 : index
    %c0_4 = arith.constant 0 : index
    %4 = vector.load %arg3[%c0_3, %c0_4] : memref<1x256xf32, #tpu.memory_space<vmem>>, vector<1x256xf32>
    %5 = vector.broadcast %4 : vector<1x256xf32> to vector<2x256xf32>
    %6 = arith.addf %3, %5 : vector<2x256xf32>
    %cst_5 = arith.constant 0.000000e+00 : f32
    %7 = vector.broadcast %cst_5 : f32 to vector<2x256xf32>
    %8 = arith.maximumf %6, %7 : vector<2x256xf32>
    %c0_6 = arith.constant 0 : index
    %c0_7 = arith.constant 0 : index
    %9 = vector.load %arg4[%c0_6, %c0_7] : memref<1x256xf32, #tpu.memory_space<vmem>>, vector<1x256xf32>
    %10 = vector.broadcast %9 : vector<1x256xf32> to vector<2x256xf32>
    %11 = arith.mulf %8, %10 : vector<2x256xf32>
    %cst_8 = arith.constant dense<0.000000e+00> : vector<2xf32>
    %12 = vector.multi_reduction <add>, %11, %cst_8 [1] : vector<2x256xf32> to vector<2xf32>
    %13 = vector.shape_cast %12 : vector<2xf32> to vector<2x1xf32>
    %c0_9 = arith.constant 0 : index
    %c0_10 = arith.constant 0 : index
    %14 = memref.load %arg5[%c0_9, %c0_10] : memref<1x1xf32, #tpu.memory_space<smem>>
    %15 = vector.broadcast %14 : f32 to vector<2x1xf32>
    %16 = arith.addf %13, %15 : vector<2x1xf32>
    %cst_11 = arith.constant 0.000000e+00 : f32
    %17 = vector.broadcast %cst_11 : f32 to vector<2x1xf32>
    %18 = arith.subf %17, %16 : vector<2x1xf32>
    %19 = math.exp %18 : vector<2x1xf32>
    %cst_12 = arith.constant 1.000000e+00 : f32
    %20 = vector.broadcast %cst_12 : f32 to vector<2x1xf32>
    %21 = arith.addf %20, %19 : vector<2x1xf32>
    %22 = tpu.reciprocal %21 {approx = true} : vector<2x1xf32> -> vector<2x1xf32>
    %c0_13 = arith.constant 0 : index
    %c0_14 = arith.constant 0 : index
    %23 = vector.load %arg6[%c0_13, %c0_14] : memref<2x1xf32, #tpu.memory_space<vmem>>, vector<2x1xf32>
    tpu.vector_store %arg6[%c0_13, %c0_14], %22 {strides = array<i32>} : memref<2x1xf32, #tpu.memory_space<vmem>>, vector<2x1xf32>,
    return
  }
  func.func @transform_0(%arg0: i32) -> (i32, i32) {
    %c0_i32 = arith.constant 0 : i32
    %c0_i32_0 = arith.constant 0 : i32
    return %arg0, %c0_i32 : i32, i32
  }
  func.func @transform_1(%arg0: i32) -> (i32, i32) {
    %c0_i32 = arith.constant 0 : i32
    %c0_i32_0 = arith.constant 0 : i32
    %c0_i32_1 = arith.constant 0 : i32
    return %c0_i32, %c0_i32_0 : i32, i32
  }
  func.func @transform_2(%arg0: i32) -> (i32, i32) {
    %c0_i32 = arith.constant 0 : i32
    %c0_i32_0 = arith.constant 0 : i32
    %c0_i32_1 = arith.constant 0 : i32
    return %c0_i32, %c0_i32_0 : i32, i32
  }
  func.func @transform_3(%arg0: i32) -> (i32, i32) {
    %c0_i32 = arith.constant 0 : i32
    %c0_i32_0 = arith.constant 0 : i32
    %c0_i32_1 = arith.constant 0 : i32
    return %c0_i32, %c0_i32_0 : i32, i32
  }
  func.func @transform_4(%arg0: i32) -> (i32, i32) {
    %c0_i32 = arith.constant 0 : i32
    %c0_i32_0 = arith.constant 0 : i32
    %c0_i32_1 = arith.constant 0 : i32
    return %c0_i32, %c0_i32_0 : i32, i32
  }
  func.func @transform_5(%arg0: i32) -> (i32, i32) {
    %c0_i32 = arith.constant 0 : i32
    %c0_i32_0 = arith.constant 0 : i32
    return %arg0, %c0_i32 : i32, i32
  }
}

</mosaic_0001>

<llo_original>
// kernel: tpu_custom_call.1
$region0: #{tpu_custom_call.1}
  #allocation0 [shape = 'u32[]', space=smem, size = 0x4, offset = 0x4, fixed_abs, tag = 'smem constant byte address 0x4 - core index']
  #allocation1 [shape = 'u32[72,128]{1,0:T(1,128)}', space=vmem, size = 0x9000, scoped, tag = 'internal scratch']
  #allocation2 [shape = 'f32[1,1]{1,0:T(1,128)S(6)}', space=smem, size = 0x200, scoped, tag = 'scoped memory for tpu_custom_call.1']
  %s0 = inlined_call_operand.hbm [shape: f32[2,1024], index: 0, kind: input, shape index: {}]
  %s1 = inlined_call_operand.hbm [shape: bf16[1024,256], index: 1, kind: input, shape index: {}]
  %s2 = inlined_call_operand.vmem [shape: f32[1,256], index: 2, kind: input, shape index: {}]
  %s3 = inlined_call_operand.vmem [shape: f32[1,256], index: 3, kind: input, shape index: {}]
  %s4 = inlined_call_operand.<no memory space> [shape: f32[1,1], index: 4, kind: input, shape index: {}]
  %s5 = inlined_call_operand.vmem [shape: f32[2,1], index: 5, kind: output, shape index: {}]
  %s6 = sld [smem:[#allocation0]]
  $region38: #{tpu_custom_call.1} parent=0
    _
  %s8 = ssub.s32 1, %s6
  %s9 = scalar_select 0, %s8, %s6
  %10 = sst [smem:[#allocation2]] %s4
  $region1: #{tpu_custom_call.1} parent=0
    #allocation3 [shape = 'u8[8192]{0}', space=vmem, size = 0x2000, scoped, tag = 'input window, operand 0, single buffered']
    #allocation4 [shape = 's32[1]{0}', space=sflag, size = 0x4, scoped, tag = 'scoped memory for tpu_custom_call.1']
    #allocation5 [shape = 'u8[524288]{0}', space=vmem, size = 0x80000, scoped, tag = 'input window, operand 1, single buffered']
    #allocation6 [shape = 's32[1]{0}', space=sflag, size = 0x4, scoped, tag = 'scoped memory for tpu_custom_call.1']
    %11 = vsyncpa [#allocation4], 0
    %12 = vsyncpa [#allocation6], 0
    // Predicated region
    $region2: #{tpu_custom_call.1} parent=1 // pred_check
      _
    $region3: #{tpu_custom_call.1} parent=1 // pred_check_branch
      %14 = sbr.rel (0) target = $region5
    $region4: #{tpu_custom_call.1} parent=1 // pred_region
      %16 = vsyncadd [#allocation4], 0
      %s18 = sshll.u32 %s0, 4
      %s19 = int_to_ptr.hbm [resolvable:$true] %s18
      %s20 = sshll.u32 [#allocation3], 4
      %s21 = int_to_ptr.vmem [resolvable:$true] %s20
      %23 = dma.hbm_to_vmem [thread:$0]  %s19, 256, %s21, [#allocation4]
    $region5: #{tpu_custom_call.1} parent=1 // pred_fallthru
      _
    // Predicated region
    $region6: #{tpu_custom_call.1} parent=1 // pred_check
      _
    $region7: #{tpu_custom_call.1} parent=1 // pred_check_branch
      %25 = sbr.rel (0) target = $region9
    $region8: #{tpu_custom_call.1} parent=1 // pred_region
      %27 = vsyncadd [#allocation6], 0
      %s28 = sshll.u32 %s1, 4
      %s29 = int_to_ptr.hbm [resolvable:$true] %s28
      %s30 = sshll.u32 [#allocation5], 4
      %s31 = int_to_ptr.vmem [resolvable:$true] %s30
      %36 = dma.hbm_to_vmem [thread:$0]  %s29, 16384, %s31, [#allocation6], 128, 128, 8
    $region9: #{tpu_custom_call.1} parent=1 // pred_fallthru
      _
    // Predicated region
    $region10: #{tpu_custom_call.1} parent=1 // pred_check
      _
    $region11: #{tpu_custom_call.1} parent=1 // pred_check_branch
      %38 = sbr.rel (0) target = $region13
    $region12: #{tpu_custom_call.1} parent=1 // pred_region
      _
    $region13: #{tpu_custom_call.1} parent=1 // pred_fallthru
      _
    // Predicated region
    $region14: #{tpu_custom_call.1} parent=1 // pred_check
      _
    $region15: #{tpu_custom_call.1} parent=1 // pred_check_branch
      %40 = sbr.rel (0) target = $region17
    $region16: #{tpu_custom_call.1} parent=1 // pred_region
      _
    $region17: #{tpu_custom_call.1} parent=1 // pred_fallthru
      _
    // Predicated region
    $region18: #{tpu_custom_call.1} parent=1 // pred_check
      _
    $region19: #{tpu_custom_call.1} parent=1 // pred_check_branch
      %42 = sbr.rel (0) target = $region21
    $region20: #{tpu_custom_call.1} parent=1 // pred_region
      _
    $region21: #{tpu_custom_call.1} parent=1 // pred_fallthru
      _
    // Predicated region
    $region22: #{tpu_custom_call.1} parent=1 // pred_check
      _
    $region23: #{tpu_custom_call.1} parent=1 // pred_check_branch
      %44 = sbr.rel (0) target = $region25
    $region24: #{tpu_custom_call.1} parent=1 // pred_region
      %46 = dma.done [#allocation4], 256
    $region25: #{tpu_custom_call.1} parent=1 // pred_fallthru
      _
    // Predicated region
    $region26: #{tpu_custom_call.1} parent=1 // pred_check
      _
    $region27: #{tpu_custom_call.1} parent=1 // pred_check_branch
      %48 = sbr.rel (0) target = $region29
    $region28: #{tpu_custom_call.1} parent=1 // pred_region
      %50 = dma.done [#allocation6], 16384
    $region29: #{tpu_custom_call.1} parent=1 // pred_fallthru
      _
    %v51 = vld [vmem:[#allocation3] sm:$0xff]
    %v52 = vld [vmem:[#allocation3 + $0x8] sm:$0xff]
    %55 = vst [vmem:[#allocation1] ss:$4 sm:$0xff] %v51
    %s56 = scalar_lea.vmem [#allocation1], 32
    %57 = vst [vmem:[%s56] ss:$4 sm:$0xff] %v52
    %v58 = vld.sshfl [vmem:[#allocation1] sm:$0xff pattern:$0x73625140]
    %v59 = vld.sshfl [vmem:[#allocation1 + $0x8] sm:$0xff pattern:$0x73625140]
    %v60 = vld.sshfl [vmem:[#allocation1 + $0x10] sm:$0xff pattern:$0x73625140]
    %v61 = vld.sshfl [vmem:[#allocation1 + $0x18] sm:$0xff pattern:$0x73625140]
    %v62 = vld.sshfl [vmem:[#allocation1 + $0x20] sm:$0xff pattern:$0x73625140]
    %v63 = vld.sshfl [vmem:[#allocation1 + $0x28] sm:$0xff pattern:$0x73625140]
    %v64 = vld.sshfl [vmem:[#allocation1 + $0x30] sm:$0xff pattern:$0x73625140]
    %v65 = vld.sshfl [vmem:[#allocation1 + $0x38] sm:$0xff pattern:$0x73625140]
    %v74 = vpack.c.bf16 %v58, %v58
    %v75 = vpack.c.bf16 %v59, %v59
    %v76 = vpack.c.bf16 %v60, %v60
    %v77 = vpack.c.bf16 %v61, %v61
    %v78 = vpack.c.bf16 %v62, %v62
    %v79 = vpack.c.bf16 %v63, %v63
    %v80 = vpack.c.bf16 %v64, %v64
    %v81 = vpack.c.bf16 %v65, %v65
    %v82 = vld [vmem:[#allocation5] sm:$0xff]
    %v83 = vld [vmem:[#allocation5 + $0x8] sm:$0xff]
    %v84 = vld [vmem:[#allocation5 + $0x10] sm:$0xff]
    %v85 = vld [vmem:[#allocation5 + $0x18] sm:$0xff]
    %v86 = vld [vmem:[#allocation5 + $0x20] sm:$0xff]
    %v87 = vld [vmem:[#allocation5 + $0x28] sm:$0xff]
    %v88 = vld [vmem:[#allocation5 + $0x30] sm:$0xff]
    %v89 = vld [vmem:[#allocation5 + $0x38] sm:$0xff]
    %v90 = vld [vmem:[#allocation5 + $0x40] sm:$0xff]
    %v91 = vld [vmem:[#allocation5 + $0x48] sm:$0xff]
    %v92 = vld [vmem:[#allocation5 + $0x50] sm:$0xff]
    %v93 = vld [vmem:[#allocation5 + $0x58] sm:$0xff]
    %v94 = vld [vmem:[#allocation5 + $0x60] sm:$0xff]
    %v95 = vld [vmem:[#allocation5 + $0x68] sm:$0xff]
    %v96 = vld [vmem:[#allocation5 + $0x70] sm:$0xff]
    %v97 = vld [vmem:[#allocation5 + $0x78] sm:$0xff]
    %v98 = vld [vmem:[#allocation5 + $0x80] sm:$0xff]
    %v99 = vld [vmem:[#allocation5 + $0x88] sm:$0xff]
    %v100 = vld [vmem:[#allocation5 + $0x90] sm:$0xff]
    %v101 = vld [vmem:[#allocation5 + $0x98] sm:$0xff]
    %v102 = vld [vmem:[#allocation5 + $0xa0] sm:$0xff]
    %v103 = vld [vmem:[#allocation5 + $0xa8] sm:$0xff]
    %v104 = vld [vmem:[#allocation5 + $0xb0] sm:$0xff]
    %v105 = vld [vmem:[#allocation5 + $0xb8] sm:$0xff]
    %v106 = vld [vmem:[#allocation5 + $0xc0] sm:$0xff]
    %v107 = vld [vmem:[#allocation5 + $0xc8] sm:$0xff]
    %v108 = vld [vmem:[#allocation5 + $0xd0] sm:$0xff]
    %v109 = vld [vmem:[#allocation5 + $0xd8] sm:$0xff]
    %v110 = vld [vmem:[#allocation5 + $0xe0] sm:$0xff]
    %v111 = vld [vmem:[#allocation5 + $0xe8] sm:$0xff]
    %v112 = vld [vmem:[#allocation5 + $0xf0] sm:$0xff]
    %v113 = vld [vmem:[#allocation5 + $0xf8] sm:$0xff]
    %v114 = vld [vmem:[#allocation5 + $0x100] sm:$0xff]
    %v115 = vld [vmem:[#allocation5 + $0x108] sm:$0xff]
    %v116 = vld [vmem:[#allocation5 + $0x110] sm:$0xff]
    %v117 = vld [vmem:[#allocation5 + $0x118] sm:$0xff]
    %v118 = vld [vmem:[#allocation5 + $0x120] sm:$0xff]
    %v119 = vld [vmem:[#allocation5 + $0x128] sm:$0xff]
    %v120 = vld [vmem:[#allocation5 + $0x130] sm:$0xff]
    %v121 = vld [vmem:[#allocation5 + $0x138] sm:$0xff]
    %v122 = vld [vmem:[#allocation5 + $0x140] sm:$0xff]
    %v123 = vld [vmem:[#allocation5 + $0x148] sm:$0xff]
    %v124 = vld [vmem:[#allocation5 + $0x150] sm:$0xff]
    %v125 = vld [vmem:[#allocation5 + $0x158] sm:$0xff]
    %v126 = vld [vmem:[#allocation5 + $0x160] sm:$0xff]
    %v127 = vld [vmem:[#allocation5 + $0x168] sm:$0xff]
    %v128 = vld [vmem:[#allocation5 + $0x170] sm:$0xff]
    %v129 = vld [vmem:[#allocation5 + $0x178] sm:$0xff]
    %v130 = vld [vmem:[#allocation5 + $0x180] sm:$0xff]
    %v131 = vld [vmem:[#allocation5 + $0x188] sm:$0xff]
    %v132 = vld [vmem:[#allocation5 + $0x190] sm:$0xff]
    %v133 = vld [vmem:[#allocation5 + $0x198] sm:$0xff]
    %v134 = vld [vmem:[#allocation5 + $0x1a0] sm:$0xff]
    %v135 = vld [vmem:[#allocation5 + $0x1a8] sm:$0xff]
    %v136 = vld [vmem:[#allocation5 + $0x1b0] sm:$0xff]
    %v137 = vld [vmem:[#allocation5 + $0x1b8] sm:$0xff]
    %v138 = vld [vmem:[#allocation5 + $0x1c0] sm:$0xff]
    %v139 = vld [vmem:[#allocation5 + $0x1c8] sm:$0xff]
    %v140 = vld [vmem:[#allocation5 + $0x1d0] sm:$0xff]
    %v141 = vld [vmem:[#allocation5 + $0x1d8] sm:$0xff]
    %v142 = vld [vmem:[#allocation5 + $0x1e0] sm:$0xff]
    %v143 = vld [vmem:[#allocation5 + $0x1e8] sm:$0xff]
    %v144 = vld [vmem:[#allocation5 + $0x1f0] sm:$0xff]
    %v145 = vld [vmem:[#allocation5 + $0x1f8] sm:$0xff]
    %v146 = vld [vmem:[#allocation5 + $0x200] sm:$0xff]
    %v147 = vld [vmem:[#allocation5 + $0x208] sm:$0xff]
    %v148 = vld [vmem:[#allocation5 + $0x210] sm:$0xff]
    %v149 = vld [vmem:[#allocation5 + $0x218] sm:$0xff]
    %v150 = vld [vmem:[#allocation5 + $0x220] sm:$0xff]
    %v151 = vld [vmem:[#allocation5 + $0x228] sm:$0xff]
    %v152 = vld [vmem:[#allocation5 + $0x230] sm:$0xff]
    %v153 = vld [vmem:[#allocation5 + $0x238] sm:$0xff]
    %v154 = vld [vmem:[#allocation5 + $0x240] sm:$0xff]
    %v155 = vld [vmem:[#allocation5 + $0x248] sm:$0xff]
    %v156 = vld [vmem:[#allocation5 + $0x250] sm:$0xff]
    %v157 = vld [vmem:[#allocation5 + $0x258] sm:$0xff]
    %v158 = vld [vmem:[#allocation5 + $0x260] sm:$0xff]
    %v159 = vld [vmem:[#allocation5 + $0x268] sm:$0xff]
    %v160 = vld [vmem:[#allocation5 + $0x270] sm:$0xff]
    %v161 = vld [vmem:[#allocation5 + $0x278] sm:$0xff]
    %v162 = vld [vmem:[#allocation5 + $0x280] sm:$0xff]
    %v163 = vld [vmem:[#allocation5 + $0x288] sm:$0xff]
    %v164 = vld [vmem:[#allocation5 + $0x290] sm:$0xff]
    %v165 = vld [vmem:[#allocation5 + $0x298] sm:$0xff]
    %v166 = vld [vmem:[#allocation5 + $0x2a0] sm:$0xff]
    %v167 = vld [vmem:[#allocation5 + $0x2a8] sm:$0xff]
    %v168 = vld [vmem:[#allocation5 + $0x2b0] sm:$0xff]
    %v169 = vld [vmem:[#allocation5 + $0x2b8] sm:$0xff]
    %v170 = vld [vmem:[#allocation5 + $0x2c0] sm:$0xff]
    %v171 = vld [vmem:[#allocation5 + $0x2c8] sm:$0xff]
    %v172 = vld [vmem:[#allocation5 + $0x2d0] sm:$0xff]
    %v173 = vld [vmem:[#allocation5 + $0x2d8] sm:$0xff]
    %v174 = vld [vmem:[#allocation5 + $0x2e0] sm:$0xff]
    %v175 = vld [vmem:[#allocation5 + $0x2e8] sm:$0xff]
    %v176 = vld [vmem:[#allocation5 + $0x2f0] sm:$0xff]
    %v177 = vld [vmem:[#allocation5 + $0x2f8] sm:$0xff]
    %v178 = vld [vmem:[#allocation5 + $0x300] sm:$0xff]
    %v179 = vld [vmem:[#allocation5 + $0x308] sm:$0xff]
    %v180 = vld [vmem:[#allocation5 + $0x310] sm:$0xff]
    %v181 = vld [vmem:[#allocation5 + $0x318] sm:$0xff]
    %v182 = vld [vmem:[#allocation5 + $0x320] sm:$0xff]
    %v183 = vld [vmem:[#allocation5 + $0x328] sm:$0xff]
    %v184 = vld [vmem:[#allocation5 + $0x330] sm:$0xff]
    %v185 = vld [vmem:[#allocation5 + $0x338] sm:$0xff]
    %v186 = vld [vmem:[#allocation5 + $0x340] sm:$0xff]
    %v187 = vld [vmem:[#allocation5 + $0x348] sm:$0xff]
    %v188 = vld [vmem:[#allocation5 + $0x350] sm:$0xff]
    %v189 = vld [vmem:[#allocation5 + $0x358] sm:$0xff]
    %v190 = vld [vmem:[#allocation5 + $0x360] sm:$0xff]
    %v191 = vld [vmem:[#allocation5 + $0x368] sm:$0xff]
    %v192 = vld [vmem:[#allocation5 + $0x370] sm:$0xff]
    %v193 = vld [vmem:[#allocation5 + $0x378] sm:$0xff]
    %v194 = vld [vmem:[#allocation5 + $0x380] sm:$0xff]
    %v195 = vld [vmem:[#allocation5 + $0x388] sm:$0xff]
    %v196 = vld [vmem:[#allocation5 + $0x390] sm:$0xff]
    %v197 = vld [vmem:[#allocation5 + $0x398] sm:$0xff]
    %v198 = vld [vmem:[#allocation5 + $0x3a0] sm:$0xff]
    %v199 = vld [vmem:[#allocation5 + $0x3a8] sm:$0xff]
    %v200 = vld [vmem:[#allocation5 + $0x3b0] sm:$0xff]
    %v201 = vld [vmem:[#allocation5 + $0x3b8] sm:$0xff]
    %v202 = vld [vmem:[#allocation5 + $0x3c0] sm:$0xff]
    %v203 = vld [vmem:[#allocation5 + $0x3c8] sm:$0xff]
    %v204 = vld [vmem:[#allocation5 + $0x3d0] sm:$0xff]
    %v205 = vld [vmem:[#allocation5 + $0x3d8] sm:$0xff]
    %v206 = vld [vmem:[#allocation5 + $0x3e0] sm:$0xff]
    %v207 = vld [vmem:[#allocation5 + $0x3e8] sm:$0xff]
    %v208 = vld [vmem:[#allocation5 + $0x3f0] sm:$0xff]
    %v209 = vld [vmem:[#allocation5 + $0x3f8] sm:$0xff]
    %v210 = vld [vmem:[%s2] sm:$0x3]
    %v212 = vperm.slane %v210, 0
    %v213 = vperm.slane %v210, 1
    %v344 = vunpack.c.l.b16 %v82
    %v345 = vunpack.c.h.b16 %v82
    %v346 = vunpack.c.l.b16 %v83
    %v347 = vunpack.c.h.b16 %v83
    %v348 = vunpack.c.l.b16 %v84
    %v349 = vunpack.c.h.b16 %v84
    %v350 = vunpack.c.l.b16 %v85
    %v351 = vunpack.c.h.b16 %v85
    %v352 = vunpack.c.l.b16 %v86
    %v353 = vunpack.c.h.b16 %v86
    %v354 = vunpack.c.l.b16 %v87
    %v355 = vunpack.c.h.b16 %v87
    %v356 = vunpack.c.l.b16 %v88
    %v357 = vunpack.c.h.b16 %v88
    %v358 = vunpack.c.l.b16 %v89
    %v359 = vunpack.c.h.b16 %v89
    %v360 = vunpack.c.l.b16 %v90
    %v361 = vunpack.c.h.b16 %v90
    %v362 = vunpack.c.l.b16 %v91
    %v363 = vunpack.c.h.b16 %v91
    %v364 = vunpack.c.l.b16 %v92
    %v365 = vunpack.c.h.b16 %v92
    %v366 = vunpack.c.l.b16 %v93
    %v367 = vunpack.c.h.b16 %v93
    %v368 = vunpack.c.l.b16 %v94
    %v369 = vunpack.c.h.b16 %v94
    %v370 = vunpack.c.l.b16 %v95
    %v371 = vunpack.c.h.b16 %v95
    %v372 = vunpack.c.l.b16 %v96
    %v373 = vunpack.c.h.b16 %v96
    %v374 = vunpack.c.l.b16 %v97
    %v375 = vunpack.c.h.b16 %v97
    %v376 = vunpack.c.l.b16 %v98
    %v377 = vunpack.c.h.b16 %v98
    %v378 = vunpack.c.l.b16 %v99
    %v379 = vunpack.c.h.b16 %v99
    %v380 = vunpack.c.l.b16 %v100
    %v381 = vunpack.c.h.b16 %v100
    %v382 = vunpack.c.l.b16 %v101
    %v383 = vunpack.c.h.b16 %v101
    %v384 = vunpack.c.l.b16 %v102
    %v385 = vunpack.c.h.b16 %v102
    %v386 = vunpack.c.l.b16 %v103
    %v387 = vunpack.c.h.b16 %v103
    %v388 = vunpack.c.l.b16 %v104
    %v389 = vunpack.c.h.b16 %v104
    %v390 = vunpack.c.l.b16 %v105
    %v391 = vunpack.c.h.b16 %v105
    %v392 = vunpack.c.l.b16 %v106
    %v393 = vunpack.c.h.b16 %v106
    %v394 = vunpack.c.l.b16 %v107
    %v395 = vunpack.c.h.b16 %v107
    %v396 = vunpack.c.l.b16 %v108
    %v397 = vunpack.c.h.b16 %v108
    %v398 = vunpack.c.l.b16 %v109
    %v399 = vunpack.c.h.b16 %v109
    %v400 = vunpack.c.l.b16 %v110
    %v401 = vunpack.c.h.b16 %v110
    %v402 = vunpack.c.l.b16 %v111
    %v403 = vunpack.c.h.b16 %v111
    %v404 = vunpack.c.l.b16 %v112
    %v405 = vunpack.c.h.b16 %v112
    %v406 = vunpack.c.l.b16 %v113
    %v407 = vunpack.c.h.b16 %v113
    %v408 = vunpack.c.l.b16 %v114
    %v409 = vunpack.c.h.b16 %v114
    %v410 = vunpack.c.l.b16 %v115
    %v411 = vunpack.c.h.b16 %v115
    %v412 = vunpack.c.l.b16 %v116
    %v413 = vunpack.c.h.b16 %v116
    %v414 = vunpack.c.l.b16 %v117
    %v415 = vunpack.c.h.b16 %v117
    %v416 = vunpack.c.l.b16 %v118
    %v417 = vunpack.c.h.b16 %v118
    %v418 = vunpack.c.l.b16 %v119
    %v419 = vunpack.c.h.b16 %v119
    %v420 = vunpack.c.l.b16 %v120
    %v421 = vunpack.c.h.b16 %v120
    %v422 = vunpack.c.l.b16 %v121
    %v423 = vunpack.c.h.b16 %v121
    %v424 = vunpack.c.l.b16 %v122
    %v425 = vunpack.c.h.b16 %v122
    %v426 = vunpack.c.l.b16 %v123
    %v427 = vunpack.c.h.b16 %v123
    %v428 = vunpack.c.l.b16 %v124
    %v429 = vunpack.c.h.b16 %v124
    %v430 = vunpack.c.l.b16 %v125
    %v431 = vunpack.c.h.b16 %v125
    %v432 = vunpack.c.l.b16 %v126
    %v433 = vunpack.c.h.b16 %v126
    %v434 = vunpack.c.l.b16 %v127
    %v435 = vunpack.c.h.b16 %v127
    %v436 = vunpack.c.l.b16 %v128
    %v437 = vunpack.c.h.b16 %v128
    %v438 = vunpack.c.l.b16 %v129
    %v439 = vunpack.c.h.b16 %v129
    %v440 = vunpack.c.l.b16 %v130
    %v441 = vunpack.c.h.b16 %v130
    %v442 = vunpack.c.l.b16 %v131
    %v443 = vunpack.c.h.b16 %v131
    %v444 = vunpack.c.l.b16 %v132
    %v445 = vunpack.c.h.b16 %v132
    %v446 = vunpack.c.l.b16 %v133
    %v447 = vunpack.c.h.b16 %v133
    %v448 = vunpack.c.l.b16 %v134
    %v449 = vunpack.c.h.b16 %v134
    %v450 = vunpack.c.l.b16 %v135
    %v451 = vunpack.c.h.b16 %v135
    %v452 = vunpack.c.l.b16 %v136
    %v453 = vunpack.c.h.b16 %v136
    %v454 = vunpack.c.l.b16 %v137
    %v455 = vunpack.c.h.b16 %v137
    %v456 = vunpack.c.l.b16 %v138
    %v457 = vunpack.c.h.b16 %v138
    %v458 = vunpack.c.l.b16 %v139
    %v459 = vunpack.c.h.b16 %v139
    %v460 = vunpack.c.l.b16 %v140
    %v461 = vunpack.c.h.b16 %v140
    %v462 = vunpack.c.l.b16 %v141
    %v463 = vunpack.c.h.b16 %v141
    %v464 = vunpack.c.l.b16 %v142
    %v465 = vunpack.c.h.b16 %v142
    %v466 = vunpack.c.l.b16 %v143
    %v467 = vunpack.c.h.b16 %v143
    %v468 = vunpack.c.l.b16 %v144
    %v469 = vunpack.c.h.b16 %v144
    %v470 = vunpack.c.l.b16 %v145
    %v471 = vunpack.c.h.b16 %v145
    %v472 = vunpack.c.l.b16 %v146
    %v473 = vunpack.c.h.b16 %v146
    %v474 = vunpack.c.l.b16 %v147
    %v475 = vunpack.c.h.b16 %v147
    %v476 = vunpack.c.l.b16 %v148
    %v477 = vunpack.c.h.b16 %v148
    %v478 = vunpack.c.l.b16 %v149
    %v479 = vunpack.c.h.b16 %v149
    %v480 = vunpack.c.l.b16 %v150
    %v481 = vunpack.c.h.b16 %v150
    %v482 = vunpack.c.l.b16 %v151
    %v483 = vunpack.c.h.b16 %v151
    %v484 = vunpack.c.l.b16 %v152
    %v485 = vunpack.c.h.b16 %v152
    %v486 = vunpack.c.l.b16 %v153
    %v487 = vunpack.c.h.b16 %v153
    %v488 = vunpack.c.l.b16 %v154
    %v489 = vunpack.c.h.b16 %v154
    %v490 = vunpack.c.l.b16 %v155
    %v491 = vunpack.c.h.b16 %v155
    %v492 = vunpack.c.l.b16 %v156
    %v493 = vunpack.c.h.b16 %v156
    %v494 = vunpack.c.l.b16 %v157
    %v495 = vunpack.c.h.b16 %v157
    %v496 = vunpack.c.l.b16 %v158
    %v497 = vunpack.c.h.b16 %v158
    %v498 = vunpack.c.l.b16 %v159
    %v499 = vunpack.c.h.b16 %v159
    %v500 = vunpack.c.l.b16 %v160
    %v501 = vunpack.c.h.b16 %v160
    %v502 = vunpack.c.l.b16 %v161
    %v503 = vunpack.c.h.b16 %v161
    %v504 = vunpack.c.l.b16 %v162
    %v505 = vunpack.c.h.b16 %v162
    %v506 = vunpack.c.l.b16 %v163
    %v507 = vunpack.c.h.b16 %v163
    %v508 = vunpack.c.l.b16 %v164
    %v509 = vunpack.c.h.b16 %v164
    %v510 = vunpack.c.l.b16 %v165
    %v511 = vunpack.c.h.b16 %v165
    %v512 = vunpack.c.l.b16 %v166
    %v513 = vunpack.c.h.b16 %v166
    %v514 = vunpack.c.l.b16 %v167
    %v515 = vunpack.c.h.b16 %v167
    %v516 = vunpack.c.l.b16 %v168
    %v517 = vunpack.c.h.b16 %v168
    %v518 = vunpack.c.l.b16 %v169
    %v519 = vunpack.c.h.b16 %v169
    %v520 = vunpack.c.l.b16 %v170
    %v521 = vunpack.c.h.b16 %v170
    %v522 = vunpack.c.l.b16 %v171
    %v523 = vunpack.c.h.b16 %v171
    %v524 = vunpack.c.l.b16 %v172
    %v525 = vunpack.c.h.b16 %v172
    %v526 = vunpack.c.l.b16 %v173
    %v527 = vunpack.c.h.b16 %v173
    %v528 = vunpack.c.l.b16 %v174
    %v529 = vunpack.c.h.b16 %v174
    %v530 = vunpack.c.l.b16 %v175
    %v531 = vunpack.c.h.b16 %v175
    %v532 = vunpack.c.l.b16 %v176
    %v533 = vunpack.c.h.b16 %v176
    %v534 = vunpack.c.l.b16 %v177
    %v535 = vunpack.c.h.b16 %v177
    %v536 = vunpack.c.l.b16 %v178
    %v537 = vunpack.c.h.b16 %v178
    %v538 = vunpack.c.l.b16 %v179
    %v539 = vunpack.c.h.b16 %v179
    %v540 = vunpack.c.l.b16 %v180
    %v541 = vunpack.c.h.b16 %v180
    %v542 = vunpack.c.l.b16 %v181
    %v543 = vunpack.c.h.b16 %v181
    %v544 = vunpack.c.l.b16 %v182
    %v545 = vunpack.c.h.b16 %v182
    %v546 = vunpack.c.l.b16 %v183
    %v547 = vunpack.c.h.b16 %v183
    %v548 = vunpack.c.l.b16 %v184
    %v549 = vunpack.c.h.b16 %v184
    %v550 = vunpack.c.l.b16 %v185
    %v551 = vunpack.c.h.b16 %v185
    %v552 = vunpack.c.l.b16 %v186
    %v553 = vunpack.c.h.b16 %v186
    %v554 = vunpack.c.l.b16 %v187
    %v555 = vunpack.c.h.b16 %v187
    %v556 = vunpack.c.l.b16 %v188
    %v557 = vunpack.c.h.b16 %v188
    %v558 = vunpack.c.l.b16 %v189
    %v559 = vunpack.c.h.b16 %v189
    %v560 = vunpack.c.l.b16 %v190
    %v561 = vunpack.c.h.b16 %v190
    %v562 = vunpack.c.l.b16 %v191
    %v563 = vunpack.c.h.b16 %v191
    %v564 = vunpack.c.l.b16 %v192
    %v565 = vunpack.c.h.b16 %v192
    %v566 = vunpack.c.l.b16 %v193
    %v567 = vunpack.c.h.b16 %v193
    %v568 = vunpack.c.l.b16 %v194
    %v569 = vunpack.c.h.b16 %v194
    %v570 = vunpack.c.l.b16 %v195
    %v571 = vunpack.c.h.b16 %v195
    %v572 = vunpack.c.l.b16 %v196
    %v573 = vunpack.c.h.b16 %v196
    %v574 = vunpack.c.l.b16 %v197
    %v575 = vunpack.c.h.b16 %v197
    %v576 = vunpack.c.l.b16 %v198
    %v577 = vunpack.c.h.b16 %v198
    %v578 = vunpack.c.l.b16 %v199
    %v579 = vunpack.c.h.b16 %v199
    %v580 = vunpack.c.l.b16 %v200
    %v581 = vunpack.c.h.b16 %v200
    %v582 = vunpack.c.l.b16 %v201
    %v583 = vunpack.c.h.b16 %v201
    %v584 = vunpack.c.l.b16 %v202
    %v585 = vunpack.c.h.b16 %v202
    %v586 = vunpack.c.l.b16 %v203
    %v587 = vunpack.c.h.b16 %v203
    %v588 = vunpack.c.l.b16 %v204
    %v589 = vunpack.c.h.b16 %v204
    %v590 = vunpack.c.l.b16 %v205
    %v591 = vunpack.c.h.b16 %v205
    %v592 = vunpack.c.l.b16 %v206
    %v593 = vunpack.c.h.b16 %v206
    %v594 = vunpack.c.l.b16 %v207
    %v595 = vunpack.c.h.b16 %v207
    %v596 = vunpack.c.l.b16 %v208
    %v597 = vunpack.c.h.b16 %v208
    %v598 = vunpack.c.l.b16 %v209
    %v599 = vunpack.c.h.b16 %v209
    %v600 = vpack.c.b16 %v346, %v344
    %v601 = vpack.c.b16 %v347, %v345
    %v602 = vpack.c.b16 %v350, %v348
    %v603 = vpack.c.b16 %v351, %v349
    %v604 = vpack.c.b16 %v354, %v352
    %v605 = vpack.c.b16 %v355, %v353
    %v606 = vpack.c.b16 %v358, %v356
    %v607 = vpack.c.b16 %v359, %v357
    %v608 = vpack.c.b16 %v362, %v360
    %v609 = vpack.c.b16 %v363, %v361
    %v610 = vpack.c.b16 %v366, %v364
    %v611 = vpack.c.b16 %v367, %v365
    %v612 = vpack.c.b16 %v370, %v368
    %v613 = vpack.c.b16 %v371, %v369
    %v614 = vpack.c.b16 %v374, %v372
    %v615 = vpack.c.b16 %v375, %v373
    %v616 = vpack.c.b16 %v378, %v376
    %v617 = vpack.c.b16 %v379, %v377
    %v618 = vpack.c.b16 %v382, %v380
    %v619 = vpack.c.b16 %v383, %v381
    %v620 = vpack.c.b16 %v386, %v384
    %v621 = vpack.c.b16 %v387, %v385
    %v622 = vpack.c.b16 %v390, %v388
    %v623 = vpack.c.b16 %v391, %v389
    %v624 = vpack.c.b16 %v394, %v392
    %v625 = vpack.c.b16 %v395, %v393
    %v626 = vpack.c.b16 %v398, %v396
    %v627 = vpack.c.b16 %v399, %v397
    %v628 = vpack.c.b16 %v402, %v400
    %v629 = vpack.c.b16 %v403, %v401
    %v630 = vpack.c.b16 %v406, %v404
    %v631 = vpack.c.b16 %v407, %v405
    %v632 = vpack.c.b16 %v410, %v408
    %v633 = vpack.c.b16 %v411, %v409
    %v634 = vpack.c.b16 %v414, %v412
    %v635 = vpack.c.b16 %v415, %v413
    %v636 = vpack.c.b16 %v418, %v416
    %v637 = vpack.c.b16 %v419, %v417
    %v638 = vpack.c.b16 %v422, %v420
    %v639 = vpack.c.b16 %v423, %v421
    %v640 = vpack.c.b16 %v426, %v424
    %v641 = vpack.c.b16 %v427, %v425
    %v642 = vpack.c.b16 %v430, %v428
    %v643 = vpack.c.b16 %v431, %v429
    %v644 = vpack.c.b16 %v434, %v432
    %v645 = vpack.c.b16 %v435, %v433
    %v646 = vpack.c.b16 %v438, %v436
    %v647 = vpack.c.b16 %v439, %v437
    %v648 = vpack.c.b16 %v442, %v440
    %v649 = vpack.c.b16 %v443, %v441
    %v650 = vpack.c.b16 %v446, %v444
    %v651 = vpack.c.b16 %v447, %v445
    %v652 = vpack.c.b16 %v450, %v448
    %v653 = vpack.c.b16 %v451, %v449
    %v654 = vpack.c.b16 %v454, %v452
    %v655 = vpack.c.b16 %v455, %v453
    %v656 = vpack.c.b16 %v458, %v456
    %v657 = vpack.c.b16 %v459, %v457
    %v658 = vpack.c.b16 %v462, %v460
    %v659 = vpack.c.b16 %v463, %v461
    %v660 = vpack.c.b16 %v466, %v464
    %v661 = vpack.c.b16 %v467, %v465
    %v662 = vpack.c.b16 %v470, %v468
    %v663 = vpack.c.b16 %v471, %v469
    %v664 = vpack.c.b16 %v474, %v472
    %v665 = vpack.c.b16 %v475, %v473
    %v666 = vpack.c.b16 %v478, %v476
    %v667 = vpack.c.b16 %v479, %v477
    %v668 = vpack.c.b16 %v482, %v480
    %v669 = vpack.c.b16 %v483, %v481
    %v670 = vpack.c.b16 %v486, %v484
    %v671 = vpack.c.b16 %v487, %v485
    %v672 = vpack.c.b16 %v490, %v488
    %v673 = vpack.c.b16 %v491, %v489
    %v674 = vpack.c.b16 %v494, %v492
    %v675 = vpack.c.b16 %v495, %v493
    %v676 = vpack.c.b16 %v498, %v496
    %v677 = vpack.c.b16 %v499, %v497
    %v678 = vpack.c.b16 %v502, %v500
    %v679 = vpack.c.b16 %v503, %v501
    %v680 = vpack.c.b16 %v506, %v504
    %v681 = vpack.c.b16 %v507, %v505
    %v682 = vpack.c.b16 %v510, %v508
    %v683 = vpack.c.b16 %v511, %v509
    %v684 = vpack.c.b16 %v514, %v512
    %v685 = vpack.c.b16 %v515, %v513
    %v686 = vpack.c.b16 %v518, %v516
    %v687 = vpack.c.b16 %v519, %v517
    %v688 = vpack.c.b16 %v522, %v520
    %v689 = vpack.c.b16 %v523, %v521
    %v690 = vpack.c.b16 %v526, %v524
    %v691 = vpack.c.b16 %v527, %v525
    %v692 = vpack.c.b16 %v530, %v528
    %v693 = vpack.c.b16 %v531, %v529
    %v694 = vpack.c.b16 %v534, %v532
    %v695 = vpack.c.b16 %v535, %v533
    %v696 = vpack.c.b16 %v538, %v536
    %v697 = vpack.c.b16 %v539, %v537
    %v698 = vpack.c.b16 %v542, %v540
    %v699 = vpack.c.b16 %v543, %v541
    %v700 = vpack.c.b16 %v546, %v544
    %v701 = vpack.c.b16 %v547, %v545
    %v702 = vpack.c.b16 %v550, %v548
    %v703 = vpack.c.b16 %v551, %v549
    %v704 = vpack.c.b16 %v554, %v552
    %v705 = vpack.c.b16 %v555, %v553
    %v706 = vpack.c.b16 %v558, %v556
    %v707 = vpack.c.b16 %v559, %v557
    %v708 = vpack.c.b16 %v562, %v560
    %v709 = vpack.c.b16 %v563, %v561
    %v710 = vpack.c.b16 %v566, %v564
    %v711 = vpack.c.b16 %v567, %v565
    %v712 = vpack.c.b16 %v570, %v568
    %v713 = vpack.c.b16 %v571, %v569
    %v714 = vpack.c.b16 %v574, %v572
    %v715 = vpack.c.b16 %v575, %v573
    %v716 = vpack.c.b16 %v578, %v576
    %v717 = vpack.c.b16 %v579, %v577
    %v718 = vpack.c.b16 %v582, %v580
    %v719 = vpack.c.b16 %v583, %v581
    %v720 = vpack.c.b16 %v586, %v584
    %v721 = vpack.c.b16 %v587, %v585
    %v722 = vpack.c.b16 %v590, %v588
    %v723 = vpack.c.b16 %v591, %v589
    %v724 = vpack.c.b16 %v594, %v592
    %v725 = vpack.c.b16 %v595, %v593
    %v726 = vpack.c.b16 %v598, %v596
    %v727 = vpack.c.b16 %v599, %v597
    %856 = vmatpush.bf16.msra.mxu0 %v614
    %857 = vmatpush.bf16.msra.mxu0 %v612
    %858 = vmatpush.bf16.msra.mxu0 %v610
    %859 = vmatpush.bf16.msra.mxu0 %v608
    %860 = vmatpush.bf16.msra.mxu0 %v606
    %861 = vmatpush.bf16.msra.mxu0 %v604
    %862 = vmatpush.bf16.msra.mxu0 %v602
    %863 = vmatpush.bf16.msra.mxu0 %v600
    %864 = vmatmul.bf16.gmra.mxu0 %v74
    %v865 = vpop.f32.mrf.mxu0
    %v866 = vadd.f32 %v212, %v865
    %v867 = vpop.f32.mrf.mxu0
    %868 = vdwg.mxu0
    %869 = vmatpush.bf16.msra.mxu0 %v630
    %870 = vmatpush.bf16.msra.mxu0 %v628
    %871 = vmatpush.bf16.msra.mxu0 %v626
    %872 = vmatpush.bf16.msra.mxu0 %v624
    %873 = vmatpush.bf16.msra.mxu0 %v622
    %874 = vmatpush.bf16.msra.mxu0 %v620
    %875 = vmatpush.bf16.msra.mxu0 %v618
    %876 = vmatpush.bf16.msra.mxu0 %v616
    %877 = vmatmul.bf16.gmra.mxu0 %v75
    %v878 = vpop.f32.mrf.mxu0
    %v879 = vadd.f32 %v866, %v878
    %v880 = vpop.f32.mrf.mxu0
    %881 = vdwg.mxu0
    %882 = vmatpush.bf16.msra.mxu0 %v646
    %883 = vmatpush.bf16.msra.mxu0 %v644
    %884 = vmatpush.bf16.msra.mxu0 %v642
    %885 = vmatpush.bf16.msra.mxu0 %v640
    %886 = vmatpush.bf16.msra.mxu0 %v638
    %887 = vmatpush.bf16.msra.mxu0 %v636
    %888 = vmatpush.bf16.msra.mxu0 %v634
    %889 = vmatpush.bf16.msra.mxu0 %v632
    %890 = vmatmul.bf16.gmra.mxu0 %v76
    %v891 = vpop.f32.mrf.mxu0
    %v892 = vadd.f32 %v879, %v891
    %v893 = vpop.f32.mrf.mxu0
    %894 = vdwg.mxu0
    %895 = vmatpush.bf16.msra.mxu0 %v662
    %896 = vmatpush.bf16.msra.mxu0 %v660
    %897 = vmatpush.bf16.msra.mxu0 %v658
    %898 = vmatpush.bf16.msra.mxu0 %v656
    %899 = vmatpush.bf16.msra.mxu0 %v654
    %900 = vmatpush.bf16.msra.mxu0 %v652
    %901 = vmatpush.bf16.msra.mxu0 %v650
    %902 = vmatpush.bf16.msra.mxu0 %v648
    %903 = vmatmul.bf16.gmra.mxu0 %v77
    %v904 = vpop.f32.mrf.mxu0
    %v905 = vadd.f32 %v892, %v904
    %v906 = vpop.f32.mrf.mxu0
    %907 = vdwg.mxu0
    %908 = vmatpush.bf16.msra.mxu0 %v678
    %909 = vmatpush.bf16.msra.mxu0 %v676
    %910 = vmatpush.bf16.msra.mxu0 %v674
    %911 = vmatpush.bf16.msra.mxu0 %v672
    %912 = vmatpush.bf16.msra.mxu0 %v670
    %913 = vmatpush.bf16.msra.mxu0 %v668
    %914 = vmatpush.bf16.msra.mxu0 %v666
    %915 = vmatpush.bf16.msra.mxu0 %v664
    %916 = vmatmul.bf16.gmra.mxu0 %v78
    %v917 = vpop.f32.mrf.mxu0
    %v918 = vadd.f32 %v905, %v917
    %v919 = vpop.f32.mrf.mxu0
    %920 = vdwg.mxu0
    %921 = vmatpush.bf16.msra.mxu0 %v694
    %922 = vmatpush.bf16.msra.mxu0 %v692
    %923 = vmatpush.bf16.msra.mxu0 %v690
    %924 = vmatpush.bf16.msra.mxu0 %v688
    %925 = vmatpush.bf16.msra.mxu0 %v686
    %926 = vmatpush.bf16.msra.mxu0 %v684
    %927 = vmatpush.bf16.msra.mxu0 %v682
    %928 = vmatpush.bf16.msra.mxu0 %v680
    %929 = vmatmul.bf16.gmra.mxu0 %v79
    %v930 = vpop.f32.mrf.mxu0
    %v931 = vadd.f32 %v918, %v930
    %v932 = vpop.f32.mrf.mxu0
    %933 = vdwg.mxu0
    %934 = vmatpush.bf16.msra.mxu0 %v710
    %935 = vmatpush.bf16.msra.mxu0 %v708
    %936 = vmatpush.bf16.msra.mxu0 %v706
    %937 = vmatpush.bf16.msra.mxu0 %v704
    %938 = vmatpush.bf16.msra.mxu0 %v702
    %939 = vmatpush.bf16.msra.mxu0 %v700
    %940 = vmatpush.bf16.msra.mxu0 %v698
    %941 = vmatpush.bf16.msra.mxu0 %v696
    %942 = vmatmul.bf16.gmra.mxu0 %v80
    %v943 = vpop.f32.mrf.mxu0
    %v944 = vadd.f32 %v931, %v943
    %v945 = vpop.f32.mrf.mxu0
    %946 = vdwg.mxu0
    %947 = vmatpush.bf16.msra.mxu0 %v726
    %948 = vmatpush.bf16.msra.mxu0 %v724
    %949 = vmatpush.bf16.msra.mxu0 %v722
    %950 = vmatpush.bf16.msra.mxu0 %v720
    %951 = vmatpush.bf16.msra.mxu0 %v718
    %952 = vmatpush.bf16.msra.mxu0 %v716
    %953 = vmatpush.bf16.msra.mxu0 %v714
    %954 = vmatpush.bf16.msra.mxu0 %v712
    %955 = vmatmul.bf16.gmra.mxu0 %v81
    %v956 = vpop.f32.mrf.mxu0
    %v957 = vadd.f32 %v944, %v956
    %v958 = vpop.f32.mrf.mxu0
    %959 = vdwg.mxu0
    %960 = vmatpush.bf16.msra.mxu0 %v615
    %961 = vmatpush.bf16.msra.mxu0 %v613
    %962 = vmatpush.bf16.msra.mxu0 %v611
    %963 = vmatpush.bf16.msra.mxu0 %v609
    %964 = vmatpush.bf16.msra.mxu0 %v607
    %965 = vmatpush.bf16.msra.mxu0 %v605
    %966 = vmatpush.bf16.msra.mxu0 %v603
    %967 = vmatpush.bf16.msra.mxu0 %v601
    %968 = vmatmul.bf16.gmra.mxu0 %v74
    %v969 = vpop.f32.mrf.mxu0
    %v970 = vadd.f32 %v213, %v969
    %v971 = vpop.f32.mrf.mxu0
    %972 = vdwg.mxu0
    %973 = vmatpush.bf16.msra.mxu0 %v631
    %974 = vmatpush.bf16.msra.mxu0 %v629
    %975 = vmatpush.bf16.msra.mxu0 %v627
    %976 = vmatpush.bf16.msra.mxu0 %v625
    %977 = vmatpush.bf16.msra.mxu0 %v623
    %978 = vmatpush.bf16.msra.mxu0 %v621
    %979 = vmatpush.bf16.msra.mxu0 %v619
    %980 = vmatpush.bf16.msra.mxu0 %v617
    %981 = vmatmul.bf16.gmra.mxu0 %v75
    %v982 = vpop.f32.mrf.mxu0
    %v983 = vadd.f32 %v970, %v982
    %v984 = vpop.f32.mrf.mxu0
    %985 = vdwg.mxu0
    %986 = vmatpush.bf16.msra.mxu0 %v647
    %987 = vmatpush.bf16.msra.mxu0 %v645
    %988 = vmatpush.bf16.msra.mxu0 %v643
    %989 = vmatpush.bf16.msra.mxu0 %v641
    %990 = vmatpush.bf16.msra.mxu0 %v639
    %991 = vmatpush.bf16.msra.mxu0 %v637
    %992 = vmatpush.bf16.msra.mxu0 %v635
    %993 = vmatpush.bf16.msra.mxu0 %v633
    %994 = vmatmul.bf16.gmra.mxu0 %v76
    %v995 = vpop.f32.mrf.mxu0
    %v996 = vadd.f32 %v983, %v995
    %v997 = vpop.f32.mrf.mxu0
    %998 = vdwg.mxu0
    %999 = vmatpush.bf16.msra.mxu0 %v663
    %1000 = vmatpush.bf16.msra.mxu0 %v661
    %1001 = vmatpush.bf16.msra.mxu0 %v659
    %1002 = vmatpush.bf16.msra.mxu0 %v657
    %1003 = vmatpush.bf16.msra.mxu0 %v655
    %1004 = vmatpush.bf16.msra.mxu0 %v653
    %1005 = vmatpush.bf16.msra.mxu0 %v651
    %1006 = vmatpush.bf16.msra.mxu0 %v649
    %1007 = vmatmul.bf16.gmra.mxu0 %v77
    %v1008 = vpop.f32.mrf.mxu0
    %v1009 = vadd.f32 %v996, %v1008
    %v1010 = vpop.f32.mrf.mxu0
    %1011 = vdwg.mxu0
    %1012 = vmatpush.bf16.msra.mxu0 %v679
    %1013 = vmatpush.bf16.msra.mxu0 %v677
    %1014 = vmatpush.bf16.msra.mxu0 %v675
    %1015 = vmatpush.bf16.msra.mxu0 %v673
    %1016 = vmatpush.bf16.msra.mxu0 %v671
    %1017 = vmatpush.bf16.msra.mxu0 %v669
    %1018 = vmatpush.bf16.msra.mxu0 %v667
    %1019 = vmatpush.bf16.msra.mxu0 %v665
    %1020 = vmatmul.bf16.gmra.mxu0 %v78
    %v1021 = vpop.f32.mrf.mxu0
    %v1022 = vadd.f32 %v1009, %v1021
    %v1023 = vpop.f32.mrf.mxu0
    %1024 = vdwg.mxu0
    %1025 = vmatpush.bf16.msra.mxu0 %v695
    %1026 = vmatpush.bf16.msra.mxu0 %v693
    %1027 = vmatpush.bf16.msra.mxu0 %v691
    %1028 = vmatpush.bf16.msra.mxu0 %v689
    %1029 = vmatpush.bf16.msra.mxu0 %v687
    %1030 = vmatpush.bf16.msra.mxu0 %v685
    %1031 = vmatpush.bf16.msra.mxu0 %v683
    %1032 = vmatpush.bf16.msra.mxu0 %v681
    %1033 = vmatmul.bf16.gmra.mxu0 %v79
    %v1034 = vpop.f32.mrf.mxu0
    %v1035 = vadd.f32 %v1022, %v1034
    %v1036 = vpop.f32.mrf.mxu0
    %1037 = vdwg.mxu0
    %1038 = vmatpush.bf16.msra.mxu0 %v711
    %1039 = vmatpush.bf16.msra.mxu0 %v709
    %1040 = vmatpush.bf16.msra.mxu0 %v707
    %1041 = vmatpush.bf16.msra.mxu0 %v705
    %1042 = vmatpush.bf16.msra.mxu0 %v703
    %1043 = vmatpush.bf16.msra.mxu0 %v701
    %1044 = vmatpush.bf16.msra.mxu0 %v699
    %1045 = vmatpush.bf16.msra.mxu0 %v697
    %1046 = vmatmul.bf16.gmra.mxu0 %v80
    %v1047 = vpop.f32.mrf.mxu0
    %v1048 = vadd.f32 %v1035, %v1047
    %v1049 = vpop.f32.mrf.mxu0
    %1050 = vdwg.mxu0
    %1051 = vmatpush.bf16.msra.mxu0 %v727
    %1052 = vmatpush.bf16.msra.mxu0 %v725
    %1053 = vmatpush.bf16.msra.mxu0 %v723
    %1054 = vmatpush.bf16.msra.mxu0 %v721
    %1055 = vmatpush.bf16.msra.mxu0 %v719
    %1056 = vmatpush.bf16.msra.mxu0 %v717
    %1057 = vmatpush.bf16.msra.mxu0 %v715
    %1058 = vmatpush.bf16.msra.mxu0 %v713
    %1059 = vmatmul.bf16.gmra.mxu0 %v81
    %v1060 = vpop.f32.mrf.mxu0
    %v1061 = vadd.f32 %v1048, %v1060
    %v1062 = vpop.f32.mrf.mxu0
    %1063 = vdwg.mxu0
    %v1064 = vmax.f32 %v957, 0.0
    %v1065 = vmax.f32 %v1061, 0.0
    %v1066 = vld [vmem:[%s3] sm:$0x3]
    %v1068 = vperm.slane %v1066, 0
    %v1069 = vperm.slane %v1066, 1
    %v1072 = vmul.f32 %v1064, %v1068
    %v1073 = vmul.f32 %v1065, %v1069
    %vm1074 = vcmask 1041408
    %v1075 = vsel %vm1074, %v1072, 0.0
    %v1076 = vsel %vm1074, %v1073, 0.0
    %v1077 = vadd.f32 %v1075, %v1076
    %1078 = vadd.xlane.f32.xlu0 %v1077
    %v1079 = vpop.xlane.xlu0 %1078
    %s1080 = sld [smem:[#allocation2]]
    %v1081 = vstv %s1080
    %v1082 = vadd.f32 %v1079, %v1081
    %v1083 = vsub.f32 0.0, %v1082
    %v1084 = vmul.f32 %v1083, 1.442695
    %v1085 = vpow.pop %v1084
    %v1086 = vadd.f32 %v1085, 1.0
    %v1087 = vrcp.pop %v1086
    %vm1088 = vcmask 1024
    %1089 = vst.msk [vmem:[%s5] sm:$0x3] %vm1088, %v1087
    // Predicated region
    $region30: #{tpu_custom_call.1} parent=1 // pred_check
      _
    $region31: #{tpu_custom_call.1} parent=1 // pred_check_branch
      %1091 = sbr.rel (0) target = $region33
    $region32: #{tpu_custom_call.1} parent=1 // pred_region
      _
    $region33: #{tpu_custom_call.1} parent=1 // pred_fallthru
      _
    // Predicated region
    $region34: #{tpu_custom_call.1} parent=1 // pred_check
      _
    $region35: #{tpu_custom_call.1} parent=1 // pred_check_branch
      %1093 = sbr.rel (0) target = $region37
    $region36: #{tpu_custom_call.1} parent=1 // pred_region
      _
    $region37: #{tpu_custom_call.1} parent=1 // pred_fallthru
      _
    %1094 = vsyncpa [#allocation4], 1
    %1095 = vsyncpa [#allocation6], 1

</llo_original>
